<compile_context>
chip_gen: v6e
topology: v6e:2x2x1
jax: 0.10.0
libtpu: 0.0.40
codegen_flags: <defaults>
</compile_context>

<pallas_src>
import functools

import jax
import jax.numpy as jnp
from jax.experimental import pallas as pl
from jax.experimental.pallas import tpu as pltpu


def _ceil_to(n, m):
    return ((n + m - 1) // m) * m


# ----------------------------------------------------------------------------- kernel
def _gru_rollout_kernel(
    x_ref,        # (1, B_PAD, X_PAD)     per-timestep input block
    h0_ref,       # (B_PAD, S_PAD)        initial recurrent state
    wx_ref,       # (X_PAD, 3*S_PAD)      fused input-side gate weights [z | r | n]
    wh_ref,       # (S_PAD, 3*S_PAD)      fused recurrent gate weights  [z | r | n]
    bih_ref,      # (1, 3*S_PAD)          input-side bias
    bhh_ref,      # (1, 3*S_PAD)          recurrent bias (r-gated for n)
    whead_ref,    # (S_PAD, HEAD_PAD)     fused [pi | val] head weights
    bhead_ref,    # (1, HEAD_PAD)         fused head bias
    scale_ref,    # (1, 1) SMEM           scale_vals scalar
    head_ref,     # (1, B_PAD, HEAD_PAD)  per-timestep head output
    hout_ref,     # (B_PAD, S_PAD)        recurrent state (VMEM-resident accumulator)
    *, val_col,
):
    t = pl.program_id(0)

    @pl.when(t == 0)
    def _():
        hout_ref[...] = h0_ref[...]

    x = x_ref[0]                      # (B_PAD, X_PAD)
    h = hout_ref[...]                 # (B_PAD, S_PAD)
    S = h.shape[1]

    # Fused gate pre-activations: one x-side and one h-side matmul.
    gx = jnp.dot(x, wx_ref[...], preferred_element_type=jnp.float32) + bih_ref[...]
    gh = jnp.dot(h, wh_ref[...], preferred_element_type=jnp.float32) + bhh_ref[...]

    z = jax.nn.sigmoid(gx[:, :S] + gh[:, :S])
    r = jax.nn.sigmoid(gx[:, S:2 * S] + gh[:, S:2 * S])
    n = jnp.tanh(gx[:, 2 * S:] + r * gh[:, 2 * S:])
    h_new = (1.0 - z) * n + z * h

    hout_ref[...] = h_new             # carried to next grid step / final output

    # Fused policy + value head: single lane-dense matmul and store.
    head = jnp.dot(h_new, whead_ref[...], preferred_element_type=jnp.float32) + bhead_ref[...]
    scale = scale_ref[0, 0]
    lane = jax.lax.broadcasted_iota(jnp.int32, head.shape, 1)
    head = jnp.where(lane == val_col, head * scale, head)   # scale only the val column
    head_ref[0] = head.astype(head_ref.dtype)


# ----------------------------------------------------------------------------- params
def init_params(key, n_bandits, state_size):
    X = n_bandits + 1
    S = state_size
    keys = jax.random.split(key, 16)

    def u(k, shape, fan_in):
        bound = 1.0 / jnp.sqrt(fan_in)
        return jax.random.uniform(k, shape, jnp.float32, -bound, bound)

    return {
        # GRU cell (stored transposed so the kernel computes x @ W, h @ U)
        "wxz": u(keys[0], (X, S), S), "whz": u(keys[1], (S, S), S),
        "wxr": u(keys[2], (X, S), S), "whr": u(keys[3], (S, S), S),
        "wxn": u(keys[4], (X, S), S), "whn": u(keys[5], (S, S), S),
        "b_ih_z": u(keys[6], (1, S), S), "b_hh_z": u(keys[7], (1, S), S),
        "b_ih_r": u(keys[8], (1, S), S), "b_hh_r": u(keys[9], (1, S), S),
        "b_ih_n": u(keys[10], (1, S), S), "b_hh_n": u(keys[11], (1, S), S),
        # heads
        "wpi": u(keys[12], (S, n_bandits), S), "bpi": u(keys[13], (1, n_bandits), S),
        "wv": u(keys[14], (S, 1), S), "bv": u(keys[15], (1, 1), S),
        # scale_vals = nn.Parameter(torch.ones(1))
        "scale_vals": jnp.ones((1, 1), jnp.float32),
    }


def pack_params(params, n_bandits, state_size):
    """Fuse + zero-pad parameters to lane-dense kernel layout (done once)."""
    X = n_bandits + 1
    S = state_size
    S_PAD = _ceil_to(S, 128)
    X_PAD = _ceil_to(X, 8)
    HEAD_PAD = _ceil_to(n_bandits + 1, 128)

    def pad2(a, rows, cols):
        return jnp.pad(a, ((0, rows - a.shape[0]), (0, cols - a.shape[1])))

    wx = jnp.concatenate([pad2(params["wxz"], X_PAD, S_PAD),
                          pad2(params["wxr"], X_PAD, S_PAD),
                          pad2(params["wxn"], X_PAD, S_PAD)], axis=1)
    wh = jnp.concatenate([pad2(params["whz"], S_PAD, S_PAD),
                          pad2(params["whr"], S_PAD, S_PAD),
                          pad2(params["whn"], S_PAD, S_PAD)], axis=1)
    b_ih = jnp.concatenate([pad2(params["b_ih_z"], 1, S_PAD),
                            pad2(params["b_ih_r"], 1, S_PAD),
                            pad2(params["b_ih_n"], 1, S_PAD)], axis=1)
    b_hh = jnp.concatenate([pad2(params["b_hh_z"], 1, S_PAD),
                            pad2(params["b_hh_r"], 1, S_PAD),
                            pad2(params["b_hh_n"], 1, S_PAD)], axis=1)
    w_head = pad2(jnp.concatenate([params["wpi"], params["wv"]], axis=1), S_PAD, HEAD_PAD)
    b_head = pad2(jnp.concatenate([params["bpi"], params["bv"]], axis=1), 1, HEAD_PAD)
    scale = params["scale_vals"].reshape(1, 1).astype(jnp.float32)

    return {"wx": wx, "wh": wh, "b_ih": b_ih, "b_hh": b_hh,
            "w_head": w_head, "b_head": b_head, "scale": scale}


# ----------------------------------------------------------------------------- wrappers
def fused_rollout(x_seq, h0, packed, n_bandits):
    """x_seq: (T, B, n_bandits+1), h0: (B, state_size).
    Returns (pis (T,B,n_bandits), vals (T,B,1), final_state (B,state_size))."""
    T, B, X = x_seq.shape
    S = h0.shape[1]
    X_PAD = packed["wx"].shape[0]
    S_PAD = packed["wh"].shape[0]
    HEAD_PAD = packed["w_head"].shape[1]
    B_PAD = _ceil_to(B, 8)

    x_p = jnp.pad(x_seq.astype(jnp.float32), ((0, 0), (0, B_PAD - B), (0, X_PAD - X)))
    h_p = jnp.pad(h0.astype(jnp.float32), ((0, B_PAD - B), (0, S_PAD - S)))

    kernel = functools.partial(_gru_rollout_kernel, val_col=n_bandits)

    head_out, h_out = pl.pallas_call(
        kernel,
        grid=(T,),
        in_specs=[
            pl.BlockSpec((1, B_PAD, X_PAD), lambda t: (t, 0, 0)),        # x_t
            pl.BlockSpec((B_PAD, S_PAD), lambda t: (0, 0)),              # h0
            pl.BlockSpec((X_PAD, 3 * S_PAD), lambda t: (0, 0)),          # wx (resident)
            pl.BlockSpec((S_PAD, 3 * S_PAD), lambda t: (0, 0)),          # wh (resident)
            pl.BlockSpec((1, 3 * S_PAD), lambda t: (0, 0)),              # b_ih
            pl.BlockSpec((1, 3 * S_PAD), lambda t: (0, 0)),              # b_hh
            pl.BlockSpec((S_PAD, HEAD_PAD), lambda t: (0, 0)),           # w_head
            pl.BlockSpec((1, HEAD_PAD), lambda t: (0, 0)),               # b_head
            pl.BlockSpec(memory_space=pltpu.MemorySpace.SMEM),           # scale scalar
        ],
        out_specs=[
            pl.BlockSpec((1, B_PAD, HEAD_PAD), lambda t: (t, 0, 0)),     # per-step heads
            pl.BlockSpec((B_PAD, S_PAD), lambda t: (0, 0)),              # final state
        ],
        out_shape=[
            jax.ShapeDtypeStruct((T, B_PAD, HEAD_PAD), jnp.float32),
            jax.ShapeDtypeStruct((B_PAD, S_PAD), jnp.float32),
        ],
        compiler_params=pltpu.CompilerParams(dimension_semantics=("arbitrary",)),
    )(x_p, h_p, packed["wx"], packed["wh"], packed["b_ih"], packed["b_hh"],
      packed["w_head"], packed["b_head"], packed["scale"])

    pis = head_out[:, :B, :n_bandits]
    vals = head_out[:, :B, n_bandits:n_bandits + 1]
    new_state = h_out[:B, :S]
    return pis, vals, new_state


def fused_forward(last_data, state_vec, packed, n_bandits):
    """Single-step forward matching Model.forward: returns (pis, vals, new_state)."""
    pis, vals, new_state = fused_rollout(last_data[None], state_vec, packed, n_bandits)
    return pis[0], vals[0], new_state


# ----------------------------------------------------------------------------- reference
def reference_step(x, h, params):
    z = jax.nn.sigmoid(x @ params["wxz"] + params["b_ih_z"]
                       + h @ params["whz"] + params["b_hh_z"])
    r = jax.nn.sigmoid(x @ params["wxr"] + params["b_ih_r"]
                       + h @ params["whr"] + params["b_hh_r"])
    n = jnp.tanh(x @ params["wxn"] + params["b_ih_n"]
                 + r * (h @ params["whn"] + params["b_hh_n"]))
    h_new = (1.0 - z) * n + z * h
    pis = h_new @ params["wpi"] + params["bpi"]
    vals = params["scale_vals"] * (h_new @ params["wv"] + params["bv"])
    return pis, vals, h_new


# ----------------------------------------------------------------------------- main
if __name__ == "__main__":
    n_bandits = 4
    state_size = 32
    batch_size = 2
    T = 8

    key = jax.random.PRNGKey(0)
    pkey, xkey, skey = jax.random.split(key, 3)

    params = init_params(pkey, n_bandits, state_size)
    packed = pack_params(params, n_bandits, state_size)

    # --- single step (matches Model.forward semantics) -----------------------
    last_data = jax.random.normal(xkey, (batch_size, n_bandits + 1), jnp.float32)
    state_vec = jnp.zeros((batch_size, state_size), jnp.float32)

    pis, vals, new_state = fused_forward(last_data, state_vec, packed, n_bandits)
    jax.block_until_ready((pis, vals, new_state))

    rpis, rvals, rstate = reference_step(last_data, state_vec, params)
    assert pis.shape == (batch_size, n_bandits)
    assert vals.shape == (batch_size, 1)
    assert new_state.shape == (batch_size, state_size)
    assert bool(jnp.allclose(pis, rpis, atol=1e-2, rtol=1e-2))
    assert bool(jnp.allclose(vals, rvals, atol=1e-2, rtol=1e-2))
    assert bool(jnp.allclose(new_state, rstate, atol=1e-2, rtol=1e-2))

    # --- fused multi-step rollout (recurrence inside one pallas_call) --------
    x_seq = jax.random.normal(skey, (T, batch_size, n_bandits + 1), jnp.float32)
    pis_seq, vals_seq, final_state = fused_rollout(
        x_seq, jnp.zeros((batch_size, state_size), jnp.float32), packed, n_bandits)
    jax.block_until_ready((pis_seq, vals_seq, final_state))

    h = jnp.zeros((batch_size, state_size), jnp.float32)
    for t in range(T):
        rp, rv, h = reference_step(x_seq[t], h, params)
    assert pis_seq.shape == (T, batch_size, n_bandits)
    assert vals_seq.shape == (T, batch_size, 1)
    assert bool(jnp.allclose(pis_seq[-1], rp, atol=1e-2, rtol=1e-2))
    assert bool(jnp.allclose(vals_seq[-1], rv, atol=1e-2, rtol=1e-2))
    assert bool(jnp.allclose(final_state, h, atol=1e-2, rtol=1e-2))

    print("KERNEL_OK")
</pallas_src>

<mosaic_0001>
module attributes {stable_mosaic.version = 11 : i64} {
  func.func @_gru_rollout_kernel(%arg0: i32, %arg1: memref<1x8x8xf32, #tpu.memory_space<vmem>>, %arg2: memref<8x128xf32, #tpu.memory_space<vmem>>, %arg3: memref<8x384xf32, #tpu.memory_space<vmem>>, %arg4: memref<128x384xf32, #tpu.memory_space<vmem>>, %arg5: memref<1x384xf32, #tpu.memory_space<vmem>>, %arg6: memref<1x384xf32, #tpu.memory_space<vmem>>, %arg7: memref<128x128xf32, #tpu.memory_space<vmem>>, %arg8: memref<1x128xf32, #tpu.memory_space<vmem>>, %arg9: memref<1x1xf32, #tpu.memory_space<smem>>, %arg10: memref<1x8x128xf32, #tpu.memory_space<vmem>>, %arg11: memref<8x128xf32, #tpu.memory_space<vmem>>) attributes {dimension_semantics = [#tpu.dimension_semantics<arbitrary>], iteration_bounds = array<i64: 1>, scalar_prefetch = 0 : i64, scratch_operands = 0 : i64, tpu.core_type = #tpu.core_type<tc>, window_params = [{transform_indices = @transform_0, window_bounds = array<i64: 1, 8, 8>}, {pipeline_mode = #tpu.pipeline_mode<synchronous>, transform_indices = @transform_1, window_bounds = array<i64: 8, 128>}, {pipeline_mode = #tpu.pipeline_mode<synchronous>, transform_indices = @transform_2, window_bounds = array<i64: 8, 384>}, {pipeline_mode = #tpu.pipeline_mode<synchronous>, transform_indices = @transform_3, window_bounds = array<i64: 128, 384>}, {pipeline_mode = #tpu.pipeline_mode<synchronous>, transform_indices = @transform_4, window_bounds = array<i64: 1, 384>}, {pipeline_mode = #tpu.pipeline_mode<synchronous>, transform_indices = @transform_5, window_bounds = array<i64: 1, 384>}, {pipeline_mode = #tpu.pipeline_mode<synchronous>, transform_indices = @transform_6, window_bounds = array<i64: 128, 128>}, {pipeline_mode = #tpu.pipeline_mode<synchronous>, transform_indices = @transform_7, window_bounds = array<i64: 1, 128>}, {transform_indices = @transform_8, window_bounds = array<i64: 1, 1>}, {transform_indices = @transform_9, window_bounds = array<i64: 1, 8, 128>}, {pipeline_mode = #tpu.pipeline_mode<synchronous>, transform_indices = @transform_10, window_bounds = array<i64: 8, 128>}]} {
    %c0_i32 = arith.constant 0 : i32
    %0 = arith.cmpi eq, %arg0, %c0_i32 : i32
    %1 = arith.extui %0 : i1 to i32
    %c0_i32_0 = arith.constant 0 : i32
    %2 = arith.cmpi ne, %1, %c0_i32_0 : i32
    scf.if %2 {
      %c0_29 = arith.constant 0 : index
      %c0_30 = arith.constant 0 : index
      %58 = vector.load %arg2[%c0_29, %c0_30] : memref<8x128xf32, #tpu.memory_space<vmem>>, vector<8x128xf32>
      %c0_31 = arith.constant 0 : index
      %c0_32 = arith.constant 0 : index
      %59 = vector.load %arg11[%c0_31, %c0_32] : memref<8x128xf32, #tpu.memory_space<vmem>>, vector<8x128xf32>
      tpu.vector_store %arg11[%c0_31, %c0_32], %58 {strides = array<i32>} : memref<8x128xf32, #tpu.memory_space<vmem>>, vector<8x128xf32>,
    } else {
    }
    %c0 = arith.constant 0 : index
    %c0_1 = arith.constant 0 : index
    %c0_2 = arith.constant 0 : index
    %3 = vector.load %arg1[%c0, %c0_1, %c0_2] : memref<1x8x8xf32, #tpu.memory_space<vmem>>, vector<1x8x8xf32>
    %4 = vector.shape_cast %3 : vector<1x8x8xf32> to vector<8x8xf32>
    %c0_3 = arith.constant 0 : index
    %c0_4 = arith.constant 0 : index
    %5 = vector.load %arg11[%c0_3, %c0_4] : memref<8x128xf32, #tpu.memory_space<vmem>>, vector<8x128xf32>
    %c0_5 = arith.constant 0 : index
    %c0_6 = arith.constant 0 : index
    %6 = vector.load %arg3[%c0_5, %c0_6] : memref<8x384xf32, #tpu.memory_space<vmem>>, vector<8x384xf32>
    %cst = arith.constant dense<0.000000e+00> : vector<8x384xf32>
    %7 = tpu.matmul %4, %6, %cst {dimension_numbers = #tpu.dot_dimension_numbers<[1], [0], [0], [1], [0, 0, 1, 1], [], []>} : vector<8x8xf32>, vector<8x384xf32>, vector<8x384xf32> -> vector<8x384xf32>
    %c0_7 = arith.constant 0 : index
    %c0_8 = arith.constant 0 : index
    %8 = vector.load %arg5[%c0_7, %c0_8] : memref<1x384xf32, #tpu.memory_space<vmem>>, vector<1x384xf32>
    %9 = vector.broadcast %8 : vector<1x384xf32> to vector<8x384xf32>
    %10 = arith.addf %7, %9 : vector<8x384xf32>
    %c0_9 = arith.constant 0 : index
    %c0_10 = arith.constant 0 : index
    %11 = vector.load %arg4[%c0_9, %c0_10] : memref<128x384xf32, #tpu.memory_space<vmem>>, vector<128x384xf32>
    %cst_11 = arith.constant dense<0.000000e+00> : vector<8x384xf32>
    %12 = tpu.matmul %5, %11, %cst_11 {dimension_numbers = #tpu.dot_dimension_numbers<[1], [0], [0], [1], [0, 0, 1, 1], [], []>} : vector<8x128xf32>, vector<128x384xf32>, vector<8x384xf32> -> vector<8x384xf32>
    %c0_12 = arith.constant 0 : index
    %c0_13 = arith.constant 0 : index
    %13 = vector.load %arg6[%c0_12, %c0_13] : memref<1x384xf32, #tpu.memory_space<vmem>>, vector<1x384xf32>
    %14 = vector.broadcast %13 : vector<1x384xf32> to vector<8x384xf32>
    %15 = arith.addf %12, %14 : vector<8x384xf32>
    %16 = vector.extract_strided_slice %10 {offsets = [0, 0], sizes = [8, 128], strides = [1, 1]} : vector<8x384xf32> to vector<8x128xf32>
    %17 = vector.extract_strided_slice %15 {offsets = [0, 0], sizes = [8, 128], strides = [1, 1]} : vector<8x384xf32> to vector<8x128xf32>
    %18 = arith.addf %16, %17 : vector<8x128xf32>
    %19 = arith.negf %18 : vector<8x128xf32>
    %20 = math.exp %19 : vector<8x128xf32>
    %cst_14 = arith.constant 1.000000e+00 : f32
    %21 = vector.broadcast %cst_14 : f32 to vector<8x128xf32>
    %22 = arith.addf %21, %20 : vector<8x128xf32>
    %23 = arith.divf %21, %22 : vector<8x128xf32>
    %24 = vector.extract_strided_slice %10 {offsets = [0, 128], sizes = [8, 128], strides = [1, 1]} : vector<8x384xf32> to vector<8x128xf32>
    %25 = vector.extract_strided_slice %15 {offsets = [0, 128], sizes = [8, 128], strides = [1, 1]} : vector<8x384xf32> to vector<8x128xf32>
    %26 = arith.addf %24, %25 : vector<8x128xf32>
    %27 = arith.negf %26 : vector<8x128xf32>
    %28 = math.exp %27 : vector<8x128xf32>
    %cst_15 = arith.constant 1.000000e+00 : f32
    %29 = vector.broadcast %cst_15 : f32 to vector<8x128xf32>
    %30 = arith.addf %29, %28 : vector<8x128xf32>
    %31 = arith.divf %29, %30 : vector<8x128xf32>
    %32 = vector.extract_strided_slice %10 {offsets = [0, 256], sizes = [8, 128], strides = [1, 1]} : vector<8x384xf32> to vector<8x128xf32>
    %33 = vector.extract_strided_slice %15 {offsets = [0, 256], sizes = [8, 128], strides = [1, 1]} : vector<8x384xf32> to vector<8x128xf32>
    %34 = arith.mulf %31, %33 : vector<8x128xf32>
    %35 = arith.addf %32, %34 : vector<8x128xf32>
    %36 = math.tanh %35 : vector<8x128xf32>
    %cst_16 = arith.constant 1.000000e+00 : f32
    %37 = vector.broadcast %cst_16 : f32 to vector<8x128xf32>
    %38 = arith.subf %37, %23 : vector<8x128xf32>
    %39 = arith.mulf %38, %36 : vector<8x128xf32>
    %40 = arith.mulf %23, %5 : vector<8x128xf32>
    %41 = arith.addf %39, %40 : vector<8x128xf32>
    %c0_17 = arith.constant 0 : index
    %c0_18 = arith.constant 0 : index
    %42 = vector.load %arg11[%c0_17, %c0_18] : memref<8x128xf32, #tpu.memory_space<vmem>>, vector<8x128xf32>
    tpu.vector_store %arg11[%c0_17, %c0_18], %41 {strides = array<i32>} : memref<8x128xf32, #tpu.memory_space<vmem>>, vector<8x128xf32>,
    %c0_19 = arith.constant 0 : index
    %c0_20 = arith.constant 0 : index
    %43 = vector.load %arg7[%c0_19, %c0_20] : memref<128x128xf32, #tpu.memory_space<vmem>>, vector<128x128xf32>
    %cst_21 = arith.constant dense<0.000000e+00> : vector<8x128xf32>
    %44 = tpu.matmul %41, %43, %cst_21 {dimension_numbers = #tpu.dot_dimension_numbers<[1], [0], [0], [1], [0, 0, 1, 1], [], []>} : vector<8x128xf32>, vector<128x128xf32>, vector<8x128xf32> -> vector<8x128xf32>
    %c0_22 = arith.constant 0 : index
    %c0_23 = arith.constant 0 : index
    %45 = vector.load %arg8[%c0_22, %c0_23] : memref<1x128xf32, #tpu.memory_space<vmem>>, vector<1x128xf32>
    %46 = vector.broadcast %45 : vector<1x128xf32> to vector<8x128xf32>
    %47 = arith.addf %44, %46 : vector<8x128xf32>
    %c0_24 = arith.constant 0 : index
    %c0_25 = arith.constant 0 : index
    %48 = memref.load %arg9[%c0_24, %c0_25] : memref<1x1xf32, #tpu.memory_space<smem>>
    %49 = tpu.iota {dimensions = array<i32: 1>} : vector<8x128xi32>
    %c4_i32 = arith.constant 4 : i32
    %50 = vector.broadcast %c4_i32 : i32 to vector<8x128xi32>
    %51 = arith.cmpi eq, %49, %50 : vector<8x128xi32>
    %52 = vector.broadcast %48 : f32 to vector<8x128xf32>
    %53 = arith.mulf %47, %52 : vector<8x128xf32>
    %54 = arith.select %51, %53, %47 : vector<8x128xi1>, vector<8x128xf32>
    %c0_26 = arith.constant 0 : index
    %c0_27 = arith.constant 0 : index
    %c0_28 = arith.constant 0 : index
    %55 = vector.load %arg10[%c0_26, %c0_27, %c0_28] : memref<1x8x128xf32, #tpu.memory_space<vmem>>, vector<1x8x128xf32>
    %56 = vector.shape_cast %55 : vector<1x8x128xf32> to vector<8x128xf32>
    %57 = vector.shape_cast %54 : vector<8x128xf32> to vector<1x8x128xf32>
    tpu.vector_store %arg10[%c0_26, %c0_27, %c0_28], %57 {strides = array<i32>} : memref<1x8x128xf32, #tpu.memory_space<vmem>>, vector<1x8x128xf32>,
    return
  }
  func.func @transform_0(%arg0: i32) -> (i32, i32, i32) {
    %c0_i32 = arith.constant 0 : i32
    %c0_i32_0 = arith.constant 0 : i32
    %c0_i32_1 = arith.constant 0 : i32
    return %arg0, %c0_i32, %c0_i32_0 : i32, i32, i32
  }
  func.func @transform_1(%arg0: i32) -> (i32, i32) {
    %c0_i32 = arith.constant 0 : i32
    %c0_i32_0 = arith.constant 0 : i32
    %c0_i32_1 = arith.constant 0 : i32
    return %c0_i32, %c0_i32_0 : i32, i32
  }
  func.func @transform_2(%arg0: i32) -> (i32, i32) {
    %c0_i32 = arith.constant 0 : i32
    %c0_i32_0 = arith.constant 0 : i32
    %c0_i32_1 = arith.constant 0 : i32
    return %c0_i32, %c0_i32_0 : i32, i32
  }
  func.func @transform_3(%arg0: i32) -> (i32, i32) {
    %c0_i32 = arith.constant 0 : i32
    %c0_i32_0 = arith.constant 0 : i32
    %c0_i32_1 = arith.constant 0 : i32
    return %c0_i32, %c0_i32_0 : i32, i32
  }
  func.func @transform_4(%arg0: i32) -> (i32, i32) {
    %c0_i32 = arith.constant 0 : i32
    %c0_i32_0 = arith.constant 0 : i32
    %c0_i32_1 = arith.constant 0 : i32
    return %c0_i32, %c0_i32_0 : i32, i32
  }
  func.func @transform_5(%arg0: i32) -> (i32, i32) {
    %c0_i32 = arith.constant 0 : i32
    %c0_i32_0 = arith.constant 0 : i32
    %c0_i32_1 = arith.constant 0 : i32
    return %c0_i32, %c0_i32_0 : i32, i32
  }
  func.func @transform_6(%arg0: i32) -> (i32, i32) {
    %c0_i32 = arith.constant 0 : i32
    %c0_i32_0 = arith.constant 0 : i32
    %c0_i32_1 = arith.constant 0 : i32
    return %c0_i32, %c0_i32_0 : i32, i32
  }
  func.func @transform_7(%arg0: i32) -> (i32, i32) {
    %c0_i32 = arith.constant 0 : i32
    %c0_i32_0 = arith.constant 0 : i32
    %c0_i32_1 = arith.constant 0 : i32
    return %c0_i32, %c0_i32_0 : i32, i32
  }
  func.func @transform_8(%arg0: i32) -> (i32, i32) {
    %c0_i32 = arith.constant 0 : i32
    %c0_i32_0 = arith.constant 0 : i32
    %c0_i32_1 = arith.constant 0 : i32
    return %c0_i32, %c0_i32_0 : i32, i32
  }
  func.func @transform_9(%arg0: i32) -> (i32, i32, i32) {
    %c0_i32 = arith.constant 0 : i32
    %c0_i32_0 = arith.constant 0 : i32
    %c0_i32_1 = arith.constant 0 : i32
    return %arg0, %c0_i32, %c0_i32_0 : i32, i32, i32
  }
  func.func @transform_10(%arg0: i32) -> (i32, i32) {
    %c0_i32 = arith.constant 0 : i32
    %c0_i32_0 = arith.constant 0 : i32
    %c0_i32_1 = arith.constant 0 : i32
    return %c0_i32, %c0_i32_0 : i32, i32
  }
}

</mosaic_0001>

<llo_original>
// kernel: tpu_custom_call.1
$region0: #{tpu_custom_call.1}
  #allocation0 [shape = 'u32[]', space=smem, size = 0x4, offset = 0x4, fixed_abs, tag = 'smem constant byte address 0x4 - core index']
  #allocation1 [shape = 'u32[144,128]{1,0:T(1,128)}', space=vmem, size = 0x12000, scoped, tag = 'internal scratch']
  #allocation2 [shape = 'f32[1,1]{1,0:T(1,128)S(6)}', space=smem, size = 0x200, scoped, tag = 'scoped memory for tpu_custom_call.1']
  %s0 = inlined_call_operand.hbm [shape: f32[1,8,8], index: 0, kind: input, shape index: {}]
  %s1 = inlined_call_operand.hbm [shape: f32[8,128], index: 1, kind: input, shape index: {}]
  %s2 = inlined_call_operand.hbm [shape: f32[8,384], index: 2, kind: input, shape index: {}]
  %s3 = inlined_call_operand.hbm [shape: f32[128,384], index: 3, kind: input, shape index: {}]
  %s4 = inlined_call_operand.vmem [shape: f32[1,384], index: 4, kind: input, shape index: {}]
  %s5 = inlined_call_operand.vmem [shape: f32[1,384], index: 5, kind: input, shape index: {}]
  %s6 = inlined_call_operand.hbm [shape: f32[128,128], index: 6, kind: input, shape index: {}]
  %s7 = inlined_call_operand.vmem [shape: f32[1,128], index: 7, kind: input, shape index: {}]
  %s8 = inlined_call_operand.<no memory space> [shape: f32[1,1], index: 8, kind: input, shape index: {}]
  %s9 = inlined_call_operand.hbm [shape: f32[1,8,128], index: 9, kind: output, shape index: {0}]
  %s10 = inlined_call_operand.hbm [shape: f32[8,128], index: 10, kind: output, shape index: {1}]
  %11 = xla_tuple %s9, %s10
  %s12 = sld [smem:[#allocation0]]
  $region78: #{tpu_custom_call.1} parent=0
    _
  %s14 = ssub.s32 1, %s12
  %s15 = scalar_select 0, %s14, %s12
  %16 = sst [smem:[#allocation2]] %s8
  $region1: #{tpu_custom_call.1} parent=0
    #allocation3 [shape = 'u8[4096]{0}', space=vmem, size = 0x1000, scoped, tag = 'input window, operand 0, single buffered']
    #allocation4 [shape = 's32[1]{0}', space=sflag, size = 0x4, scoped, tag = 'scoped memory for tpu_custom_call.1']
    #allocation5 [shape = 's32[1]{0}', space=sflag, size = 0x4, scoped, tag = 'scoped memory for tpu_custom_call.1']
    #allocation6 [shape = 'u8[4096]{0}', space=vmem, size = 0x1000, scoped, tag = 'input window, operand 1, single buffered']
    #allocation7 [shape = 's32[1]{0}', space=sflag, size = 0x4, scoped, tag = 'scoped memory for tpu_custom_call.1']
    #allocation8 [shape = 'u8[12288]{0}', space=vmem, size = 0x3000, scoped, tag = 'input window, operand 2, single buffered']
    #allocation9 [shape = 'u8[196608]{0}', space=vmem, size = 0x30000, scoped, tag = 'input window, operand 3, single buffered']
    #allocation10 [shape = 's32[1]{0}', space=sflag, size = 0x4, scoped, tag = 'scoped memory for tpu_custom_call.1']
    #allocation11 [shape = 'u8[65536]{0}', space=vmem, size = 0x10000, scoped, tag = 'input window, operand 6, single buffered']
    #allocation12 [shape = 'u8[4096]{0}', space=vmem, size = 0x1000, scoped, tag = 'output window, operand 0, single buffered']
    #allocation13 [shape = 'u8[4096]{0}', space=vmem, size = 0x1000, scoped, tag = 'output window, operand 1, single buffered']
    #allocation14 [shape = 's32[1]{0}', space=sflag, size = 0x4, scoped, tag = 'scoped memory for tpu_custom_call.1']
    %17 = vsyncpa [#allocation4], 0
    %18 = vsyncpa [#allocation7], 0
    %19 = vsyncpa [#allocation10], 0
    %20 = vsyncpa [#allocation5], 0
    %21 = vsyncpa [#allocation14], 0
    // Predicated region
    $region2: #{tpu_custom_call.1} parent=1 // pred_check
      _
    $region3: #{tpu_custom_call.1} parent=1 // pred_check_branch
      %23 = sbr.rel (0) target = $region5
    $region4: #{tpu_custom_call.1} parent=1 // pred_region
      %s25 = ssub.s32 128, 128
      %26 = vsyncadd [#allocation4], %s25
      %s28 = sshll.u32 [#allocation3], 4
      %s29 = int_to_ptr.vmem [resolvable:$true] %s28
      %31 = dma.hbm_to_vmem [thread:$0]  %s0, 128, %s29, [#allocation4]
    $region5: #{tpu_custom_call.1} parent=1 // pred_fallthru
      _
    // Predicated region
    $region6: #{tpu_custom_call.1} parent=1 // pred_check
      _
    $region7: #{tpu_custom_call.1} parent=1 // pred_check_branch
      %33 = sbr.rel (0) target = $region9
    $region8: #{tpu_custom_call.1} parent=1 // pred_region
      %s35 = ssub.s32 128, 128
      %36 = vsyncadd [#allocation7], %s35
      %s38 = sshll.u32 [#allocation6], 4
      %s39 = int_to_ptr.vmem [resolvable:$true] %s38
      %41 = dma.hbm_to_vmem [thread:$0]  %s1, 128, %s39, [#allocation7]
    $region9: #{tpu_custom_call.1} parent=1 // pred_fallthru
      _
    // Predicated region
    $region10: #{tpu_custom_call.1} parent=1 // pred_check
      _
    $region11: #{tpu_custom_call.1} parent=1 // pred_check_branch
      %43 = sbr.rel (0) target = $region13
    $region12: #{tpu_custom_call.1} parent=1 // pred_region
      %s45 = ssub.s32 384, 384
      %46 = vsyncadd [#allocation7], %s45
      %s48 = sshll.u32 [#allocation8], 4
      %s49 = int_to_ptr.vmem [resolvable:$true] %s48
      %51 = dma.hbm_to_vmem [thread:$0]  %s2, 384, %s49, [#allocation7]
    $region13: #{tpu_custom_call.1} parent=1 // pred_fallthru
      _
    // Predicated region
    $region14: #{tpu_custom_call.1} parent=1 // pred_check
      _
    $region15: #{tpu_custom_call.1} parent=1 // pred_check_branch
      %53 = sbr.rel (0) target = $region17
    $region16: #{tpu_custom_call.1} parent=1 // pred_region
      %s55 = ssub.s32 6144, 6144
      %56 = vsyncadd [#allocation10], %s55
      %s57 = sshll.u32 [#allocation9], 4
      %s58 = int_to_ptr.vmem [resolvable:$true] %s57
      %63 = dma.hbm_to_vmem [thread:$0]  %s3, 6144, %s58, [#allocation10], 384, 384, 24
    $region17: #{tpu_custom_call.1} parent=1 // pred_fallthru
      _
    // Predicated region
    $region18: #{tpu_custom_call.1} parent=1 // pred_check
      _
    $region19: #{tpu_custom_call.1} parent=1 // pred_check_branch
      %65 = sbr.rel (0) target = $region21
    $region20: #{tpu_custom_call.1} parent=1 // pred_region
      _
    $region21: #{tpu_custom_call.1} parent=1 // pred_fallthru
      _
    // Predicated region
    $region22: #{tpu_custom_call.1} parent=1 // pred_check
      _
    $region23: #{tpu_custom_call.1} parent=1 // pred_check_branch
      %67 = sbr.rel (0) target = $region25
    $region24: #{tpu_custom_call.1} parent=1 // pred_region
      _
    $region25: #{tpu_custom_call.1} parent=1 // pred_fallthru
      _
    // Predicated region
    $region26: #{tpu_custom_call.1} parent=1 // pred_check
      _
    $region27: #{tpu_custom_call.1} parent=1 // pred_check_branch
      %69 = sbr.rel (0) target = $region29
    $region28: #{tpu_custom_call.1} parent=1 // pred_region
      %s71 = ssub.s32 2048, 2048
      %72 = vsyncadd [#allocation10], %s71
      %s73 = sshll.u32 [#allocation11], 4
      %s74 = int_to_ptr.vmem [resolvable:$true] %s73
      %79 = dma.hbm_to_vmem [thread:$0]  %s6, 2048, %s74, [#allocation10], 128, 128, 8
    $region29: #{tpu_custom_call.1} parent=1 // pred_fallthru
      _
    // Predicated region
    $region30: #{tpu_custom_call.1} parent=1 // pred_check
      _
    $region31: #{tpu_custom_call.1} parent=1 // pred_check_branch
      %81 = sbr.rel (0) target = $region33
    $region32: #{tpu_custom_call.1} parent=1 // pred_region
      _
    $region33: #{tpu_custom_call.1} parent=1 // pred_fallthru
      _
    // Predicated region
    $region34: #{tpu_custom_call.1} parent=1 // pred_check
      _
    $region35: #{tpu_custom_call.1} parent=1 // pred_check_branch
      %83 = sbr.rel (0) target = $region37
    $region36: #{tpu_custom_call.1} parent=1 // pred_region
      _
    $region37: #{tpu_custom_call.1} parent=1 // pred_fallthru
      _
    // Predicated region
    $region38: #{tpu_custom_call.1} parent=1 // pred_check
      _
    $region39: #{tpu_custom_call.1} parent=1 // pred_check_branch
      %85 = sbr.rel (0) target = $region41
    $region40: #{tpu_custom_call.1} parent=1 // pred_region
      %86 = dma.done [#allocation4], 128
    $region41: #{tpu_custom_call.1} parent=1 // pred_fallthru
      _
    // Predicated region
    $region42: #{tpu_custom_call.1} parent=1 // pred_check
      _
    $region43: #{tpu_custom_call.1} parent=1 // pred_check_branch
      %88 = sbr.rel (0) target = $region45
    $region44: #{tpu_custom_call.1} parent=1 // pred_region
      %89 = dma.done [#allocation7], 128
    $region45: #{tpu_custom_call.1} parent=1 // pred_fallthru
      _
    // Predicated region
    $region46: #{tpu_custom_call.1} parent=1 // pred_check
      _
    $region47: #{tpu_custom_call.1} parent=1 // pred_check_branch
      %91 = sbr.rel (0) target = $region49
    $region48: #{tpu_custom_call.1} parent=1 // pred_region
      %92 = dma.done [#allocation7], 384
    $region49: #{tpu_custom_call.1} parent=1 // pred_fallthru
      _
    // Predicated region
    $region50: #{tpu_custom_call.1} parent=1 // pred_check
      _
    $region51: #{tpu_custom_call.1} parent=1 // pred_check_branch
      %94 = sbr.rel (0) target = $region53
    $region52: #{tpu_custom_call.1} parent=1 // pred_region
      %95 = dma.done [#allocation10], 6144
    $region53: #{tpu_custom_call.1} parent=1 // pred_fallthru
      _
    // Predicated region
    $region54: #{tpu_custom_call.1} parent=1 // pred_check
      _
    $region55: #{tpu_custom_call.1} parent=1 // pred_check_branch
      %97 = sbr.rel (0) target = $region57
    $region56: #{tpu_custom_call.1} parent=1 // pred_region
      %98 = dma.done [#allocation10], 2048
    $region57: #{tpu_custom_call.1} parent=1 // pred_fallthru
      _
    %p99 = scmp.eq.s32.totalorder 0, 0
    // Predicated region
    $region58: #{tpu_custom_call.1} parent=1 // pred_check
      %p100 = pneg %p99
    $region59: #{tpu_custom_call.1} parent=1 // pred_check_branch
      %102 = sbr.rel (%p100) target = $region61
    $region60: #{tpu_custom_call.1} parent=1 // pred_region
      %v103 = vld [vmem:[#allocation6] sm:$0xff]
      %104 = vst [vmem:[#allocation13] sm:$0xff] %v103
    $region61: #{tpu_custom_call.1} parent=1 // pred_fallthru
      _
    %v105 = vld [vmem:[#allocation3] sm:$0xff]
    %v106 = vld [vmem:[#allocation13] sm:$0xff]
    %v107 = vld [vmem:[#allocation8] sm:$0xff]
    %v108 = vld [vmem:[#allocation8 + $0x8] sm:$0xff]
    %v109 = vld [vmem:[#allocation8 + $0x10] sm:$0xff]
    %v110 = vld [vmem:[%s4] sm:$0x7]
    %v112 = vlaneseq
    %v113 = vshrl.u32 %v112, 7
    %v114 = vsub.s32 0, %v113
    %v115 = vrot.slane %v110, %v114
    %v116 = vlaneseq
    %v117 = vshrl.u32 %v116, 7
    %v118 = vsub.s32 1, %v117
    %v119 = vrot.slane %v110, %v118
    %v120 = vlaneseq
    %v121 = vshrl.u32 %v120, 7
    %v122 = vsub.s32 2, %v121
    %v123 = vrot.slane %v110, %v122
    %vm127 = vcmask 64512
    %v129 = vsel %vm127, %v105, 0
    %131 = vmatprep.subr.mxu0 0.0
    %132 = vmatpush1.msra.mxu0 0.0
    %133 = vmatprep.subr.mxu0 0.0
    %134 = vmatpush1.msra.mxu0 0.0
    %135 = vmatprep.subr.mxu0 0.0
    %136 = vmatpush1.msra.mxu0 0.0
    %137 = vmatprep.subr.mxu0 0.0
    %138 = vmatpush1.msra.mxu0 0.0
    %139 = vmatprep.subr.mxu0 0.0
    %140 = vmatpush1.msra.mxu0 0.0
    %141 = vmatprep.subr.mxu0 0.0
    %142 = vmatpush1.msra.mxu0 0.0
    %143 = vmatprep.subr.mxu0 0.0
    %144 = vmatpush1.msra.mxu0 0.0
    %145 = vmatprep.subr.mxu0 0.0
    %146 = vmatpush1.msra.mxu0 0.0
    %147 = vmatprep.subr.mxu0 0.0
    %148 = vmatpush1.msra.mxu0 0.0
    %149 = vmatprep.subr.mxu0 0.0
    %150 = vmatpush1.msra.mxu0 0.0
    %151 = vmatprep.subr.mxu0 0.0
    %152 = vmatpush1.msra.mxu0 0.0
    %153 = vmatprep.subr.mxu0 0.0
    %154 = vmatpush1.msra.mxu0 0.0
    %155 = vmatprep.subr.mxu0 0.0
    %156 = vmatpush1.msra.mxu0 0.0
    %157 = vmatprep.subr.mxu0 0.0
    %158 = vmatpush1.msra.mxu0 0.0
    %159 = vmatprep.subr.mxu0 0.0
    %160 = vmatpush1.msra.mxu0 0.0
    %161 = vmatprep.subr.mxu0 %v108
    %162 = vmatpush1.msra.mxu0 %v107
    %163 = vmatprep.subr.mxu0 0.0
    %164 = vmatpush2.msra.mxu0 0.0
    %165 = vmatprep.subr.mxu0 0.0
    %166 = vmatpush2.msra.mxu0 0.0
    %167 = vmatprep.subr.mxu0 0.0
    %168 = vmatpush2.msra.mxu0 0.0
    %169 = vmatprep.subr.mxu0 0.0
    %170 = vmatpush2.msra.mxu0 0.0
    %171 = vmatprep.subr.mxu0 0.0
    %172 = vmatpush2.msra.mxu0 0.0
    %173 = vmatprep.subr.mxu0 0.0
    %174 = vmatpush2.msra.mxu0 0.0
    %175 = vmatprep.subr.mxu0 0.0
    %176 = vmatpush2.msra.mxu0 0.0
    %177 = vmatprep.subr.mxu0 0.0
    %178 = vmatpush2.msra.mxu0 0.0
    %179 = vmatprep.subr.mxu0 0.0
    %180 = vmatpush2.msra.mxu0 0.0
    %181 = vmatprep.subr.mxu0 0.0
    %182 = vmatpush2.msra.mxu0 0.0
    %183 = vmatprep.subr.mxu0 0.0
    %184 = vmatpush2.msra.mxu0 0.0
    %185 = vmatprep.subr.mxu0 0.0
    %186 = vmatpush2.msra.mxu0 0.0
    %187 = vmatprep.subr.mxu0 0.0
    %188 = vmatpush2.msra.mxu0 0.0
    %189 = vmatprep.subr.mxu0 0.0
    %190 = vmatpush2.msra.mxu0 0.0
    %191 = vmatprep.subr.mxu0 0.0
    %192 = vmatpush2.msra.mxu0 0.0
    %193 = vmatprep.subr.mxu0 0.0
    %194 = vmatpush2.msra.mxu0 0.0
    %195 = vmatprep.mubr.f32.mxu0 0.0
    %196 = vmatmul.mubr.f32.gmra.mxu0 %v129
    %v197 = vpop.f32.mrf.mxu0
    %v198 = vadd.f32 %v115, %v197
    %v199 = vpop.f32.mrf.mxu0
    %v200 = vadd.f32 %v119, %v199
    %201 = vdwg.mxu0
    %202 = vmatprep.subr.mxu0 0.0
    %203 = vmatpush1.msra.mxu0 0.0
    %204 = vmatprep.subr.mxu0 0.0
    %205 = vmatpush1.msra.mxu0 0.0
    %206 = vmatprep.subr.mxu0 0.0
    %207 = vmatpush1.msra.mxu0 0.0
    %208 = vmatprep.subr.mxu0 0.0
    %209 = vmatpush1.msra.mxu0 0.0
    %210 = vmatprep.subr.mxu0 0.0
    %211 = vmatpush1.msra.mxu0 0.0
    %212 = vmatprep.subr.mxu0 0.0
    %213 = vmatpush1.msra.mxu0 0.0
    %214 = vmatprep.subr.mxu0 0.0
    %215 = vmatpush1.msra.mxu0 0.0
    %216 = vmatprep.subr.mxu0 0.0
    %217 = vmatpush1.msra.mxu0 0.0
    %218 = vmatprep.subr.mxu0 0.0
    %219 = vmatpush1.msra.mxu0 0.0
    %220 = vmatprep.subr.mxu0 0.0
    %221 = vmatpush1.msra.mxu0 0.0
    %222 = vmatprep.subr.mxu0 0.0
    %223 = vmatpush1.msra.mxu0 0.0
    %224 = vmatprep.subr.mxu0 0.0
    %225 = vmatpush1.msra.mxu0 0.0
    %226 = vmatprep.subr.mxu0 0.0
    %227 = vmatpush1.msra.mxu0 0.0
    %228 = vmatprep.subr.mxu0 0.0
    %229 = vmatpush1.msra.mxu0 0.0
    %230 = vmatprep.subr.mxu0 0.0
    %231 = vmatpush1.msra.mxu0 0.0
    %232 = vmatprep.subr.mxu0 0.0
    %233 = vmatpush1.msra.mxu0 %v109
    %234 = vmatprep.subr.mxu0 0.0
    %235 = vmatpush2.msra.mxu0 0.0
    %236 = vmatprep.subr.mxu0 0.0
    %237 = vmatpush2.msra.mxu0 0.0
    %238 = vmatprep.subr.mxu0 0.0
    %239 = vmatpush2.msra.mxu0 0.0
    %240 = vmatprep.subr.mxu0 0.0
    %241 = vmatpush2.msra.mxu0 0.0
    %242 = vmatprep.subr.mxu0 0.0
    %243 = vmatpush2.msra.mxu0 0.0
    %244 = vmatprep.subr.mxu0 0.0
    %245 = vmatpush2.msra.mxu0 0.0
    %246 = vmatprep.subr.mxu0 0.0
    %247 = vmatpush2.msra.mxu0 0.0
    %248 = vmatprep.subr.mxu0 0.0
    %249 = vmatpush2.msra.mxu0 0.0
    %250 = vmatprep.subr.mxu0 0.0
    %251 = vmatpush2.msra.mxu0 0.0
    %252 = vmatprep.subr.mxu0 0.0
    %253 = vmatpush2.msra.mxu0 0.0
    %254 = vmatprep.subr.mxu0 0.0
    %255 = vmatpush2.msra.mxu0 0.0
    %256 = vmatprep.subr.mxu0 0.0
    %257 = vmatpush2.msra.mxu0 0.0
    %258 = vmatprep.subr.mxu0 0.0
    %259 = vmatpush2.msra.mxu0 0.0
    %260 = vmatprep.subr.mxu0 0.0
    %261 = vmatpush2.msra.mxu0 0.0
    %262 = vmatprep.subr.mxu0 0.0
    %263 = vmatpush2.msra.mxu0 0.0
    %264 = vmatprep.subr.mxu0 0.0
    %265 = vmatpush2.msra.mxu0 0.0
    %266 = vmatprep.mubr.f32.mxu0 0.0
    %267 = vmatmul.mubr.f32.gmra.mxu0 %v129
    %v268 = vpop.f32.mrf.mxu0
    %v269 = vadd.f32 %v123, %v268
    %v270 = vpop.f32.mrf.mxu0
    %271 = vdwg.mxu0
    %v272 = vld [vmem:[#allocation9] sm:$0xff]
    %v273 = vld [vmem:[#allocation9 + $0x8] sm:$0xff]
    %v274 = vld [vmem:[#allocation9 + $0x10] sm:$0xff]
    %v275 = vld [vmem:[#allocation9 + $0x18] sm:$0xff]
    %v276 = vld [vmem:[#allocation9 + $0x20] sm:$0xff]
    %v277 = vld [vmem:[#allocation9 + $0x28] sm:$0xff]
    %v278 = vld [vmem:[#allocation9 + $0x30] sm:$0xff]
    %v279 = vld [vmem:[#allocation9 + $0x38] sm:$0xff]
    %v280 = vld [vmem:[#allocation9 + $0x40] sm:$0xff]
    %v281 = vld [vmem:[#allocation9 + $0x48] sm:$0xff]
    %v282 = vld [vmem:[#allocation9 + $0x50] sm:$0xff]
    %v283 = vld [vmem:[#allocation9 + $0x58] sm:$0xff]
    %v284 = vld [vmem:[#allocation9 + $0x60] sm:$0xff]
    %v285 = vld [vmem:[#allocation9 + $0x68] sm:$0xff]
    %v286 = vld [vmem:[#allocation9 + $0x70] sm:$0xff]
    %v287 = vld [vmem:[#allocation9 + $0x78] sm:$0xff]
    %v288 = vld [vmem:[#allocation9 + $0x80] sm:$0xff]
    %v289 = vld [vmem:[#allocation9 + $0x88] sm:$0xff]
    %v290 = vld [vmem:[#allocation9 + $0x90] sm:$0xff]
    %v291 = vld [vmem:[#allocation9 + $0x98] sm:$0xff]
    %v292 = vld [vmem:[#allocation9 + $0xa0] sm:$0xff]
    %v293 = vld [vmem:[#allocation9 + $0xa8] sm:$0xff]
    %v294 = vld [vmem:[#allocation9 + $0xb0] sm:$0xff]
    %v295 = vld [vmem:[#allocation9 + $0xb8] sm:$0xff]
    %v296 = vld [vmem:[#allocation9 + $0xc0] sm:$0xff]
    %v297 = vld [vmem:[#allocation9 + $0xc8] sm:$0xff]
    %v298 = vld [vmem:[#allocation9 + $0xd0] sm:$0xff]
    %v299 = vld [vmem:[#allocation9 + $0xd8] sm:$0xff]
    %v300 = vld [vmem:[#allocation9 + $0xe0] sm:$0xff]
    %v301 = vld [vmem:[#allocation9 + $0xe8] sm:$0xff]
    %v302 = vld [vmem:[#allocation9 + $0xf0] sm:$0xff]
    %v303 = vld [vmem:[#allocation9 + $0xf8] sm:$0xff]
    %v304 = vld [vmem:[#allocation9 + $0x100] sm:$0xff]
    %v305 = vld [vmem:[#allocation9 + $0x108] sm:$0xff]
    %v306 = vld [vmem:[#allocation9 + $0x110] sm:$0xff]
    %v307 = vld [vmem:[#allocation9 + $0x118] sm:$0xff]
    %v308 = vld [vmem:[#allocation9 + $0x120] sm:$0xff]
    %v309 = vld [vmem:[#allocation9 + $0x128] sm:$0xff]
    %v310 = vld [vmem:[#allocation9 + $0x130] sm:$0xff]
    %v311 = vld [vmem:[#allocation9 + $0x138] sm:$0xff]
    %v312 = vld [vmem:[#allocation9 + $0x140] sm:$0xff]
    %v313 = vld [vmem:[#allocation9 + $0x148] sm:$0xff]
    %v314 = vld [vmem:[#allocation9 + $0x150] sm:$0xff]
    %v315 = vld [vmem:[#allocation9 + $0x158] sm:$0xff]
    %v316 = vld [vmem:[#allocation9 + $0x160] sm:$0xff]
    %v317 = vld [vmem:[#allocation9 + $0x168] sm:$0xff]
    %v318 = vld [vmem:[#allocation9 + $0x170] sm:$0xff]
    %v319 = vld [vmem:[#allocation9 + $0x178] sm:$0xff]
    %v320 = vld [vmem:[%s5] sm:$0x7]
    %v322 = vlaneseq
    %v323 = vshrl.u32 %v322, 7
    %v324 = vsub.s32 0, %v323
    %v325 = vrot.slane %v320, %v324
    %v326 = vlaneseq
    %v327 = vshrl.u32 %v326, 7
    %v328 = vsub.s32 1, %v327
    %v329 = vrot.slane %v320, %v328
    %v330 = vlaneseq
    %v331 = vshrl.u32 %v330, 7
    %v332 = vsub.s32 2, %v331
    %v333 = vrot.slane %v320, %v332
    %337 = vmatprep.subr.mxu0 %v318
    %338 = vmatpush1.msra.mxu0 %v317
    %339 = vmatprep.subr.mxu0 %v315
    %340 = vmatpush1.msra.mxu0 %v314
    %341 = vmatprep.subr.mxu0 %v312
    %342 = vmatpush1.msra.mxu0 %v311
    %343 = vmatprep.subr.mxu0 %v309
    %344 = vmatpush1.msra.mxu0 %v308
    %345 = vmatprep.subr.mxu0 %v306
    %346 = vmatpush1.msra.mxu0 %v305
    %347 = vmatprep.subr.mxu0 %v303
    %348 = vmatpush1.msra.mxu0 %v302
    %349 = vmatprep.subr.mxu0 %v300
    %350 = vmatpush1.msra.mxu0 %v299
    %351 = vmatprep.subr.mxu0 %v297
    %352 = vmatpush1.msra.mxu0 %v296
    %353 = vmatprep.subr.mxu0 %v294
    %354 = vmatpush1.msra.mxu0 %v293
    %355 = vmatprep.subr.mxu0 %v291
    %356 = vmatpush1.msra.mxu0 %v290
    %357 = vmatprep.subr.mxu0 %v288
    %358 = vmatpush1.msra.mxu0 %v287
    %359 = vmatprep.subr.mxu0 %v285
    %360 = vmatpush1.msra.mxu0 %v284
    %361 = vmatprep.subr.mxu0 %v282
    %362 = vmatpush1.msra.mxu0 %v281
    %363 = vmatprep.subr.mxu0 %v279
    %364 = vmatpush1.msra.mxu0 %v278
    %365 = vmatprep.subr.mxu0 %v276
    %366 = vmatpush1.msra.mxu0 %v275
    %367 = vmatprep.subr.mxu0 %v273
    %368 = vmatpush1.msra.mxu0 %v272
    %369 = vmatprep.subr.mxu0 0.0
    %370 = vmatpush2.msra.mxu0 0.0
    %371 = vmatprep.subr.mxu0 0.0
    %372 = vmatpush2.msra.mxu0 0.0
    %373 = vmatprep.subr.mxu0 0.0
    %374 = vmatpush2.msra.mxu0 0.0
    %375 = vmatprep.subr.mxu0 0.0
    %376 = vmatpush2.msra.mxu0 0.0
    %377 = vmatprep.subr.mxu0 0.0
    %378 = vmatpush2.msra.mxu0 0.0
    %379 = vmatprep.subr.mxu0 0.0
    %380 = vmatpush2.msra.mxu0 0.0
    %381 = vmatprep.subr.mxu0 0.0
    %382 = vmatpush2.msra.mxu0 0.0
    %383 = vmatprep.subr.mxu0 0.0
    %384 = vmatpush2.msra.mxu0 0.0
    %385 = vmatprep.subr.mxu0 0.0
    %386 = vmatpush2.msra.mxu0 0.0
    %387 = vmatprep.subr.mxu0 0.0
    %388 = vmatpush2.msra.mxu0 0.0
    %389 = vmatprep.subr.mxu0 0.0
    %390 = vmatpush2.msra.mxu0 0.0
    %391 = vmatprep.subr.mxu0 0.0
    %392 = vmatpush2.msra.mxu0 0.0
    %393 = vmatprep.subr.mxu0 0.0
    %394 = vmatpush2.msra.mxu0 0.0
    %395 = vmatprep.subr.mxu0 0.0
    %396 = vmatpush2.msra.mxu0 0.0
    %397 = vmatprep.subr.mxu0 0.0
    %398 = vmatpush2.msra.mxu0 0.0
    %399 = vmatprep.subr.mxu0 0.0
    %400 = vmatpush2.msra.mxu0 0.0
    %401 = vmatprep.mubr.f32.mxu0 0.0
    %402 = vmatmul.mubr.f32.gmra.mxu0 %v106
    %v403 = vpop.f32.mrf.mxu0
    %v404 = vadd.f32 %v325, %v403
    %v405 = vpop.f32.mrf.mxu0
    %v406 = vadd.f32 %v329, %v405
    %407 = vdwg.mxu0
    %408 = vmatprep.subr.mxu0 0.0
    %409 = vmatpush1.msra.mxu0 %v319
    %410 = vmatprep.subr.mxu0 0.0
    %411 = vmatpush1.msra.mxu0 %v316
    %412 = vmatprep.subr.mxu0 0.0
    %413 = vmatpush1.msra.mxu0 %v313
    %414 = vmatprep.subr.mxu0 0.0
    %415 = vmatpush1.msra.mxu0 %v310
    %416 = vmatprep.subr.mxu0 0.0
    %417 = vmatpush1.msra.mxu0 %v307
    %418 = vmatprep.subr.mxu0 0.0
    %419 = vmatpush1.msra.mxu0 %v304
    %420 = vmatprep.subr.mxu0 0.0
    %421 = vmatpush1.msra.mxu0 %v301
    %422 = vmatprep.subr.mxu0 0.0
    %423 = vmatpush1.msra.mxu0 %v298
    %424 = vmatprep.subr.mxu0 0.0
    %425 = vmatpush1.msra.mxu0 %v295
    %426 = vmatprep.subr.mxu0 0.0
    %427 = vmatpush1.msra.mxu0 %v292
    %428 = vmatprep.subr.mxu0 0.0
    %429 = vmatpush1.msra.mxu0 %v289
    %430 = vmatprep.subr.mxu0 0.0
    %431 = vmatpush1.msra.mxu0 %v286
    %432 = vmatprep.subr.mxu0 0.0
    %433 = vmatpush1.msra.mxu0 %v283
    %434 = vmatprep.subr.mxu0 0.0
    %435 = vmatpush1.msra.mxu0 %v280
    %436 = vmatprep.subr.mxu0 0.0
    %437 = vmatpush1.msra.mxu0 %v277
    %438 = vmatprep.subr.mxu0 0.0
    %439 = vmatpush1.msra.mxu0 %v274
    %440 = vmatprep.subr.mxu0 0.0
    %441 = vmatpush2.msra.mxu0 0.0
    %442 = vmatprep.subr.mxu0 0.0
    %443 = vmatpush2.msra.mxu0 0.0
    %444 = vmatprep.subr.mxu0 0.0
    %445 = vmatpush2.msra.mxu0 0.0
    %446 = vmatprep.subr.mxu0 0.0
    %447 = vmatpush2.msra.mxu0 0.0
    %448 = vmatprep.subr.mxu0 0.0
    %449 = vmatpush2.msra.mxu0 0.0
    %450 = vmatprep.subr.mxu0 0.0
    %451 = vmatpush2.msra.mxu0 0.0
    %452 = vmatprep.subr.mxu0 0.0
    %453 = vmatpush2.msra.mxu0 0.0
    %454 = vmatprep.subr.mxu0 0.0
    %455 = vmatpush2.msra.mxu0 0.0
    %456 = vmatprep.subr.mxu0 0.0
    %457 = vmatpush2.msra.mxu0 0.0
    %458 = vmatprep.subr.mxu0 0.0
    %459 = vmatpush2.msra.mxu0 0.0
    %460 = vmatprep.subr.mxu0 0.0
    %461 = vmatpush2.msra.mxu0 0.0
    %462 = vmatprep.subr.mxu0 0.0
    %463 = vmatpush2.msra.mxu0 0.0
    %464 = vmatprep.subr.mxu0 0.0
    %465 = vmatpush2.msra.mxu0 0.0
    %466 = vmatprep.subr.mxu0 0.0
    %467 = vmatpush2.msra.mxu0 0.0
    %468 = vmatprep.subr.mxu0 0.0
    %469 = vmatpush2.msra.mxu0 0.0
    %470 = vmatprep.subr.mxu0 0.0
    %471 = vmatpush2.msra.mxu0 0.0
    %472 = vmatprep.mubr.f32.mxu0 0.0
    %473 = vmatmul.mubr.f32.gmra.mxu0 %v106
    %v474 = vpop.f32.mrf.mxu0
    %v475 = vadd.f32 %v333, %v474
    %v476 = vpop.f32.mrf.mxu0
    %477 = vdwg.mxu0
    %v478 = vadd.f32 %v198, %v404
    %v479 = vxor.u32 %v478, 2147483648
    %v480 = vmul.f32 %v479, 1.442695
    %v481 = vpow.pop %v480
    %v482 = vadd.f32 %v481, 1.0
    %v483 = vrcp.pop %v482
    %v484 = vmul.f32 1.0, %v483
    %v485 = vadd.f32 %v200, %v406
    %v486 = vxor.u32 %v485, 2147483648
    %v487 = vmul.f32 %v486, 1.442695
    %v488 = vpow.pop %v487
    %v489 = vadd.f32 %v488, 1.0
    %v490 = vrcp.pop %v489
    %v491 = vmul.f32 1.0, %v490
    %v492 = vmul.f32 %v491, %v475
    %v493 = vadd.f32 %v269, %v492
    %v494 = vtanh.pop %v493
    %v495 = vsub.f32 1.0, %v484
    %v496 = vmul.f32 %v495, %v494
    %v497 = vmul.f32 %v484, %v106
    %v498 = vadd.f32 %v496, %v497
    %499 = vst [vmem:[#allocation13] sm:$0xff] %v498
    %v500 = vld [vmem:[#allocation11] sm:$0xff]
    %v501 = vld [vmem:[#allocation11 + $0x8] sm:$0xff]
    %v502 = vld [vmem:[#allocation11 + $0x10] sm:$0xff]
    %v503 = vld [vmem:[#allocation11 + $0x18] sm:$0xff]
    %v504 = vld [vmem:[#allocation11 + $0x20] sm:$0xff]
    %v505 = vld [vmem:[#allocation11 + $0x28] sm:$0xff]
    %v506 = vld [vmem:[#allocation11 + $0x30] sm:$0xff]
    %v507 = vld [vmem:[#allocation11 + $0x38] sm:$0xff]
    %v508 = vld [vmem:[#allocation11 + $0x40] sm:$0xff]
    %v509 = vld [vmem:[#allocation11 + $0x48] sm:$0xff]
    %v510 = vld [vmem:[#allocation11 + $0x50] sm:$0xff]
    %v511 = vld [vmem:[#allocation11 + $0x58] sm:$0xff]
    %v512 = vld [vmem:[#allocation11 + $0x60] sm:$0xff]
    %v513 = vld [vmem:[#allocation11 + $0x68] sm:$0xff]
    %v514 = vld [vmem:[#allocation11 + $0x70] sm:$0xff]
    %v515 = vld [vmem:[#allocation11 + $0x78] sm:$0xff]
    %v516 = vld [vmem:[%s7] sm:$0x1]
    %v518 = vlaneseq
    %v519 = vshrl.u32 %v518, 7
    %v520 = vsub.s32 0, %v519
    %v521 = vrot.slane %v516, %v520
    %523 = vmatprep.subr.mxu0 0.0
    %524 = vmatpush1.msra.mxu0 %v515
    %525 = vmatprep.subr.mxu0 0.0
    %526 = vmatpush1.msra.mxu0 %v514
    %527 = vmatprep.subr.mxu0 0.0
    %528 = vmatpush1.msra.mxu0 %v513
    %529 = vmatprep.subr.mxu0 0.0
    %530 = vmatpush1.msra.mxu0 %v512
    %531 = vmatprep.subr.mxu0 0.0
    %532 = vmatpush1.msra.mxu0 %v511
    %533 = vmatprep.subr.mxu0 0.0
    %534 = vmatpush1.msra.mxu0 %v510
    %535 = vmatprep.subr.mxu0 0.0
    %536 = vmatpush1.msra.mxu0 %v509
    %537 = vmatprep.subr.mxu0 0.0
    %538 = vmatpush1.msra.mxu0 %v508
    %539 = vmatprep.subr.mxu0 0.0
    %540 = vmatpush1.msra.mxu0 %v507
    %541 = vmatprep.subr.mxu0 0.0
    %542 = vmatpush1.msra.mxu0 %v506
    %543 = vmatprep.subr.mxu0 0.0
    %544 = vmatpush1.msra.mxu0 %v505
    %545 = vmatprep.subr.mxu0 0.0
    %546 = vmatpush1.msra.mxu0 %v504
    %547 = vmatprep.subr.mxu0 0.0
    %548 = vmatpush1.msra.mxu0 %v503
    %549 = vmatprep.subr.mxu0 0.0
    %550 = vmatpush1.msra.mxu0 %v502
    %551 = vmatprep.subr.mxu0 0.0
    %552 = vmatpush1.msra.mxu0 %v501
    %553 = vmatprep.subr.mxu0 0.0
    %554 = vmatpush1.msra.mxu0 %v500
    %555 = vmatprep.subr.mxu0 0.0
    %556 = vmatpush2.msra.mxu0 0.0
    %557 = vmatprep.subr.mxu0 0.0
    %558 = vmatpush2.msra.mxu0 0.0
    %559 = vmatprep.subr.mxu0 0.0
    %560 = vmatpush2.msra.mxu0 0.0
    %561 = vmatprep.subr.mxu0 0.0
    %562 = vmatpush2.msra.mxu0 0.0
    %563 = vmatprep.subr.mxu0 0.0
    %564 = vmatpush2.msra.mxu0 0.0
    %565 = vmatprep.subr.mxu0 0.0
    %566 = vmatpush2.msra.mxu0 0.0
    %567 = vmatprep.subr.mxu0 0.0
    %568 = vmatpush2.msra.mxu0 0.0
    %569 = vmatprep.subr.mxu0 0.0
    %570 = vmatpush2.msra.mxu0 0.0
    %571 = vmatprep.subr.mxu0 0.0
    %572 = vmatpush2.msra.mxu0 0.0
    %573 = vmatprep.subr.mxu0 0.0
    %574 = vmatpush2.msra.mxu0 0.0
    %575 = vmatprep.subr.mxu0 0.0
    %576 = vmatpush2.msra.mxu0 0.0
    %577 = vmatprep.subr.mxu0 0.0
    %578 = vmatpush2.msra.mxu0 0.0
    %579 = vmatprep.subr.mxu0 0.0
    %580 = vmatpush2.msra.mxu0 0.0
    %581 = vmatprep.subr.mxu0 0.0
    %582 = vmatpush2.msra.mxu0 0.0
    %583 = vmatprep.subr.mxu0 0.0
    %584 = vmatpush2.msra.mxu0 0.0
    %585 = vmatprep.subr.mxu0 0.0
    %586 = vmatpush2.msra.mxu0 0.0
    %587 = vmatprep.mubr.f32.mxu0 0.0
    %588 = vmatmul.mubr.f32.gmra.mxu0 %v498
    %v589 = vpop.f32.mrf.mxu0
    %v590 = vadd.f32 %v521, %v589
    %v591 = vpop.f32.mrf.mxu0
    %592 = vdwg.mxu0
    %s593 = sld [smem:[#allocation2]]
    %v594 = vlaneseq
    %v595 = vand.u32 %v594, 127
    %vm596 = vcmp.eq.s32.totalorder %v595, 4
    %v597 = vstv %s593
    %v598 = vmul.f32 %v590, %v597
    %v599 = vsel %vm596, %v598, %v590
    %600 = vst [vmem:[#allocation12] sm:$0xff] %v599
    // Predicated region
    $region62: #{tpu_custom_call.1} parent=1 // pred_check
      _
    $region63: #{tpu_custom_call.1} parent=1 // pred_check_branch
      %602 = sbr.rel (0) target = $region65
    $region64: #{tpu_custom_call.1} parent=1 // pred_region
      %s604 = ssub.s32 128, 128
      %605 = vsyncadd [#allocation5], %s604
      %s607 = sshll.u32 [#allocation12], 4
      %s608 = int_to_ptr.vmem [resolvable:$true] %s607
      %610 = dma.vmem_to_hbm [thread:$0]  %s608, 128, %s9, [#allocation5]
    $region65: #{tpu_custom_call.1} parent=1 // pred_fallthru
      _
    // Predicated region
    $region66: #{tpu_custom_call.1} parent=1 // pred_check
      _
    $region67: #{tpu_custom_call.1} parent=1 // pred_check_branch
      %612 = sbr.rel (0) target = $region69
    $region68: #{tpu_custom_call.1} parent=1 // pred_region
      %s614 = ssub.s32 128, 128
      %615 = vsyncadd [#allocation14], %s614
      %s617 = sshll.u32 [#allocation13], 4
      %s618 = int_to_ptr.vmem [resolvable:$true] %s617
      %620 = dma.vmem_to_hbm [thread:$0]  %s618, 128, %s10, [#allocation14]
    $region69: #{tpu_custom_call.1} parent=1 // pred_fallthru
      _
    // Predicated region
    $region70: #{tpu_custom_call.1} parent=1 // pred_check
      _
    $region71: #{tpu_custom_call.1} parent=1 // pred_check_branch
      %622 = sbr.rel (0) target = $region73
    $region72: #{tpu_custom_call.1} parent=1 // pred_region
      %623 = dma.done [#allocation5], 128
    $region73: #{tpu_custom_call.1} parent=1 // pred_fallthru
      _
    // Predicated region
    $region74: #{tpu_custom_call.1} parent=1 // pred_check
      _
    $region75: #{tpu_custom_call.1} parent=1 // pred_check_branch
      %625 = sbr.rel (0) target = $region77
    $region76: #{tpu_custom_call.1} parent=1 // pred_region
      %626 = dma.done [#allocation14], 128
    $region77: #{tpu_custom_call.1} parent=1 // pred_fallthru
      _
    %627 = vsyncpa [#allocation4], 1
    %628 = vsyncpa [#allocation7], 1
    %629 = vsyncpa [#allocation10], 1
    %630 = vsyncpa [#allocation5], 1
    %631 = vsyncpa [#allocation14], 1

</llo_original>
